<compile_context>
chip_gen: v7x
topology: tpu7x:2x2x1
jax: 0.10.0
libtpu: 0.0.40
codegen_flags: <defaults>
</compile_context>

<pallas_src>
import functools

import jax
import jax.numpy as jnp
from jax.experimental import pallas as pl
from jax.experimental.pallas import tpu as pltpu


_INV_SQRT2 = 0.7071067811865476
_SQRT_2_OVER_PI = 0.7978845608028654
_GELU_TANH_C = 0.044715


def _gelu_f32(h, approx):
    """GELU in f32.  approx=True -> tanh form (EUP), False -> torch-exact erf."""
    if approx:
        inner = _SQRT_2_OVER_PI * (h + _GELU_TANH_C * h * h * h)
        return 0.5 * h * (1.0 + jnp.tanh(inner))
    return 0.5 * h * (1.0 + jax.lax.erf(h * _INV_SQRT2))


# ----------------------------------------------------------------------------
# Kernels
# ----------------------------------------------------------------------------
def _ffn_kernel_single(x_ref, w1_ref, b1_ref, w2_ref, b2_ref, o_ref, *,
                       approx_gelu):
    """Full 4H resident in one slab: no accumulator, write output directly."""
    x = x_ref[...].astype(w1_ref.dtype)                       # in-kernel cast
    h = jnp.dot(x, w1_ref[...], preferred_element_type=jnp.float32)
    h = _gelu_f32(h + b1_ref[...], approx_gelu).astype(w2_ref.dtype)
    out = jnp.dot(h, w2_ref[...], preferred_element_type=jnp.float32)
    o_ref[...] = (out + b2_ref[...]).astype(o_ref.dtype)


def _ffn_kernel_tiled(x_ref, w1_ref, b1_ref, w2_ref, b2_ref, o_ref, acc_ref, *,
                      approx_gelu):
    """4H split into slabs: accumulate partial second matmul in f32 VMEM."""
    k = pl.program_id(1)

    @pl.when(k == 0)
    def _():
        acc_ref[...] = jnp.zeros_like(acc_ref)

    x = x_ref[...].astype(w1_ref.dtype)
    h = jnp.dot(x, w1_ref[...], preferred_element_type=jnp.float32)
    h = _gelu_f32(h + b1_ref[...], approx_gelu).astype(w2_ref.dtype)
    acc_ref[...] += jnp.dot(h, w2_ref[...], preferred_element_type=jnp.float32)

    @pl.when(k == pl.num_programs(1) - 1)
    def _():
        o_ref[...] = (acc_ref[...] + b2_ref[...]).astype(o_ref.dtype)


# ----------------------------------------------------------------------------
# Sizing helpers
# ----------------------------------------------------------------------------
def _tpu_generation():
    """(vmem_capacity_bytes, num_tensorcores_per_chip) with safe fallbacks."""
    kind = ""
    try:
        kind = jax.devices()[0].device_kind.lower()
    except Exception:  # pragma: no cover - defensive
        pass
    num_tc = 2 if "v7" in kind else 1

    vmem = None
    try:
        vmem = int(pltpu.get_tpu_info().vmem_capacity_bytes)
    except Exception:  # pragma: no cover - defensive
        vmem = None
    if vmem is None:
        if "v5" in kind or "v6" in kind:
            vmem = 128 << 20
        else:
            vmem = 64 << 20          # conservative (v7x per-TC) when unknown
    return vmem, num_tc


def _pick_4h_tile(h4, target_cols):
    """Largest divisor of h4 that is <= target_cols, preferring multiples of
    256 (v6e/v7x MXU), then 128 (v5e); otherwise the full extent."""
    if h4 <= target_cols:
        return h4
    for step in (256, 128):
        if h4 % step:
            continue
        best = 0
        for t in range(step, int(target_cols) + 1, step):
            if h4 % t == 0:
                best = t
        if best:
            return best
    return h4


# ----------------------------------------------------------------------------
# Wrapper
# ----------------------------------------------------------------------------
@functools.partial(jax.jit, static_argnames=("block_m", "block_n4",
                                             "compute_dtype", "approx_gelu"))
def position_wise_feed_forward(x, w1, b1, w2, b2, *, block_m=512,
                               block_n4=None, compute_dtype=jnp.bfloat16,
                               approx_gelu=True):
    """x: [B, S, H]; w1: [H, 4H]; b1: [4H]; w2: [4H, H]; b2: [H].

    compute_dtype selects the matmul dtype (default bf16 = MXU-native);
    bias-add, GELU and accumulation always run in f32; output keeps x.dtype.
    approx_gelu=False reproduces torch's exact erf GELU bit-for-bit in f32.
    """
    B, S, H = x.shape
    H4 = w1.shape[1]
    M = B * S
    out_dtype = x.dtype

    cdt = jnp.dtype(out_dtype) if compute_dtype is None else jnp.dtype(compute_dtype)
    csz = cdt.itemsize
    xsz = jnp.dtype(x.dtype).itemsize
    osz = jnp.dtype(out_dtype).itemsize

    # x stays in its original dtype: the kernel casts each tile after the DMA,
    # avoiding a wrapper-side full HBM read+write of the activations.
    x2d = x.reshape(M, H)
    # Weights at compute dtype (no-op if params are already stored in bf16).
    w1c = w1.astype(cdt)
    w2c = w2.astype(cdt)
    b1_2d = b1.reshape(1, H4).astype(jnp.float32)
    b2_2d = b2.reshape(1, H).astype(jnp.float32)

    # --- generation-aware VMEM budget --------------------------------------
    vmem_phys, num_tc = _tpu_generation()
    vmem_cap = min(vmem_phys - (12 << 20), 100 << 20)   # headroom below physical
    if num_tc >= 2:                                     # v7x: 64 MiB / TC
        vmem_cap = min(vmem_cap, 52 << 20)
    vmem_cap = max(vmem_cap, 24 << 20)

    # --- 4H slab: resident W1+W2 slabs <= ~half the scoped VMEM budget ------
    if block_n4 is None:
        per_col = 2 * H * csz                  # one W1 column + one W2 row
        target_cols = max(128, min(H4, ((vmem_cap // 2) // per_col) // 128 * 128))
    else:
        target_cols = int(block_n4)
    tn4 = _pick_4h_tile(H4, target_cols)
    if H4 % tn4 != 0:
        tn4 = H4                               # never pad the reduction axis
    n_k = H4 // tn4

    # --- row tile ------------------------------------------------------------
    bm = int(block_m)
    if n_k > 1 and vmem_phys >= (100 << 20):
        # Big-VMEM chips (v5e/v6e): larger row tile halves weight re-fetch.
        bm = max(bm, 1024)
    bm = max(8, -(-bm // 8) * 8)
    tm = min(bm, M)
    # Split a single full-extent row tile only when 2 TensorCores exist (v7x).
    if tm == M and M >= 16 and num_tc >= 2:
        tm = -(-((M + 1) // 2) // 8) * 8
    n_m = pl.cdiv(M, tm)

    # Single-buffer operands whose block never changes across the grid.
    const_buf = dict(pipeline_mode=pl.Buffered(1))
    w_buf = const_buf if n_k == 1 else {}

    # --- VMEM estimate / limit ----------------------------------------------
    wbuf_n = 1 if n_k == 1 else 2
    vmem_est = (2 * tm * H * (xsz + osz)                    # x + out (dbl buf)
                + wbuf_n * (2 * H * tn4 * csz + tn4 * 4)    # W1+W2 slabs, b1
                + H * 4                                     # b2
                + (0 if n_k == 1 else tm * H * 4)           # f32 accumulator
                + tm * tn4 * 4)                             # f32 intermediate
    vmem_limit = int(min(max(vmem_est * 5 // 4 + (8 << 20), 32 << 20), vmem_cap))

    cost = pl.CostEstimate(
        flops=4 * M * H * H4,
        transcendentals=M * H4,
        bytes_accessed=(M * H * (xsz + osz)
                        + (1 if n_k == 1 else n_m) * 2 * H * H4 * csz
                        + (H4 + H) * 4),
    )

    if n_k == 1:
        kernel = functools.partial(_ffn_kernel_single, approx_gelu=approx_gelu)
        scratch = []
    else:
        kernel = functools.partial(_ffn_kernel_tiled, approx_gelu=approx_gelu)
        scratch = [pltpu.VMEM((tm, H), jnp.float32)]

    out = pl.pallas_call(
        kernel,
        out_shape=jax.ShapeDtypeStruct((M, H), out_dtype),
        grid_spec=pltpu.PrefetchScalarGridSpec(
            num_scalar_prefetch=0,
            grid=(n_m, n_k),
            in_specs=[
                pl.BlockSpec((tm, H), lambda i, k: (i, 0)),              # x rows
                pl.BlockSpec((H, tn4), lambda i, k: (0, k), **w_buf),    # W1 slab
                pl.BlockSpec((1, tn4), lambda i, k: (0, k), **w_buf),    # b1 slab
                pl.BlockSpec((tn4, H), lambda i, k: (k, 0), **w_buf),    # W2 slab
                pl.BlockSpec((1, H), lambda i, k: (0, 0), **const_buf),  # b2
            ],
            out_specs=pl.BlockSpec((tm, H), lambda i, k: (i, 0)),
            scratch_shapes=scratch,
        ),
        compiler_params=pltpu.CompilerParams(
            dimension_semantics=("parallel", "arbitrary"),
            vmem_limit_bytes=vmem_limit,
        ),
        cost_estimate=cost,
    )(x2d, w1c, b1_2d, w2c, b2_2d)

    return out.reshape(B, S, H)


# ----------------------------------------------------------------------------
# Params / reference
# ----------------------------------------------------------------------------
def init_params(key, hidden_size, initializer_range=0.02, dtype=jnp.float32):
    """Mirrors the PyTorch module init: weights ~ N(0, initializer_range),
    biases ~ nn.Linear default U(-1/sqrt(fan_in), 1/sqrt(fan_in)).
    Weights stored as (in_features, out_features).  Store in bf16 to avoid
    the per-call weight convert on the fast path."""
    H, H4 = hidden_size, hidden_size * 4
    k1, k2, k3, k4 = jax.random.split(key, 4)
    w1 = (initializer_range * jax.random.normal(k1, (H, H4))).astype(dtype)
    w2 = (initializer_range * jax.random.normal(k2, (H4, H))).astype(dtype)
    bound1 = 1.0 / jnp.sqrt(H)
    bound2 = 1.0 / jnp.sqrt(H4)
    b1 = jax.random.uniform(k3, (H4,), minval=-bound1, maxval=bound1).astype(dtype)
    b2 = jax.random.uniform(k4, (H,), minval=-bound2, maxval=bound2).astype(dtype)
    return w1, b1, w2, b2


def _reference_ffn(x, w1, b1, w2, b2):
    # torch F.gelu default (exact erf), all in f32.
    h = x @ w1 + b1
    h = 0.5 * h * (1.0 + jax.lax.erf(h * _INV_SQRT2))
    return h @ w2 + b2


if __name__ == "__main__":
    key = jax.random.PRNGKey(0)
    kx, kp, kx2, kp2 = jax.random.split(key, 4)

    # --- Test 1: default fast path (bf16 MXU matmuls + tanh GELU) ----------
    B, S, H = 2, 8, 32
    x = jax.random.normal(kx, (B, S, H), dtype=jnp.float32)
    w1, b1, w2, b2 = init_params(kp, H)
    y = position_wise_feed_forward(x, w1, b1, w2, b2)
    jax.block_until_ready(y)
    y_ref = _reference_ffn(x, w1, b1, w2, b2)
    assert y.shape == (B, S, H)
    assert jnp.allclose(y, y_ref, atol=2e-2, rtol=2e-2), "default (bf16+tanh) mismatch"

    # --- Test 2: f32 + exact erf GELU: tight parity with torch's forward ---
    y32 = position_wise_feed_forward(x, w1, b1, w2, b2,
                                     compute_dtype=jnp.float32,
                                     approx_gelu=False)
    jax.block_until_ready(y32)
    assert jnp.allclose(y32, y_ref, atol=1e-5, rtol=1e-5), "f32 exact path mismatch"

    # --- Test 3: forced 4H tiling (accumulator kernel) + ragged row tile ----
    B2, S2, H2 = 2, 7, 64            # M = 14: exercises the ragged last block
    x2 = jax.random.normal(kx2, (B2, S2, H2), dtype=jnp.float32)
    p2 = init_params(kp2, H2)
    y2 = position_wise_feed_forward(x2, *p2, block_m=8, block_n4=128,
                                    compute_dtype=jnp.float32,
                                    approx_gelu=False)
    jax.block_until_ready(y2)
    y2_ref = _reference_ffn(x2, *p2)
    assert jnp.allclose(y2, y2_ref, atol=1e-5, rtol=1e-5), "tiled-4H mismatch"

    print("KERNEL_OK")
</pallas_src>

<mosaic_0001>
module attributes {stable_mosaic.version = 11 : i64} {
  func.func @_ffn_kernel_single(%arg0: i32, %arg1: i32, %arg2: memref<16x32xf32, #tpu.memory_space<vmem>>, %arg3: memref<32x128xbf16, #tpu.memory_space<vmem>>, %arg4: memref<1x128xf32, #tpu.memory_space<vmem>>, %arg5: memref<128x32xbf16, #tpu.memory_space<vmem>>, %arg6: memref<1x32xf32, #tpu.memory_space<vmem>>, %arg7: memref<16x32xf32, #tpu.memory_space<vmem>>) attributes {dimension_semantics = [#tpu.dimension_semantics<parallel>, #tpu.dimension_semantics<arbitrary>], iteration_bounds = array<i64: 1, 1>, scalar_prefetch = 0 : i64, scratch_operands = 0 : i64, tpu.core_type = #tpu.core_type<tc>, window_params = [{transform_indices = @transform_0, window_bounds = array<i64: 16, 32>}, {pipeline_mode = #tpu.pipeline_mode<synchronous>, transform_indices = @transform_1, window_bounds = array<i64: 32, 128>}, {pipeline_mode = #tpu.pipeline_mode<synchronous>, transform_indices = @transform_2, window_bounds = array<i64: 1, 128>}, {pipeline_mode = #tpu.pipeline_mode<synchronous>, transform_indices = @transform_3, window_bounds = array<i64: 128, 32>}, {pipeline_mode = #tpu.pipeline_mode<synchronous>, transform_indices = @transform_4, window_bounds = array<i64: 1, 32>}, {transform_indices = @transform_5, window_bounds = array<i64: 16, 32>}]} {
    %c0 = arith.constant 0 : index
    %c0_0 = arith.constant 0 : index
    %0 = vector.load %arg2[%c0, %c0_0] : memref<16x32xf32, #tpu.memory_space<vmem>>, vector<16x32xf32>
    %1 = arith.truncf %0 : vector<16x32xf32> to vector<16x32xbf16>
    %c0_1 = arith.constant 0 : index
    %c0_2 = arith.constant 0 : index
    %2 = vector.load %arg3[%c0_1, %c0_2] : memref<32x128xbf16, #tpu.memory_space<vmem>>, vector<32x128xbf16>
    %cst = arith.constant dense<0.000000e+00> : vector<16x128xf32>
    %3 = tpu.matmul %1, %2, %cst {dimension_numbers = #tpu.dot_dimension_numbers<[1], [0], [0], [1], [0, 0, 1, 1], [], []>} : vector<16x32xbf16>, vector<32x128xbf16>, vector<16x128xf32> -> vector<16x128xf32>
    %c0_3 = arith.constant 0 : index
    %c0_4 = arith.constant 0 : index
    %4 = vector.load %arg4[%c0_3, %c0_4] : memref<1x128xf32, #tpu.memory_space<vmem>>, vector<1x128xf32>
    %5 = vector.broadcast %4 : vector<1x128xf32> to vector<16x128xf32>
    %6 = arith.addf %3, %5 : vector<16x128xf32>
    %cst_5 = arith.constant 4.471500e-02 : f32
    %7 = vector.broadcast %cst_5 : f32 to vector<16x128xf32>
    %8 = arith.mulf %7, %6 : vector<16x128xf32>
    %9 = arith.mulf %8, %6 : vector<16x128xf32>
    %10 = arith.mulf %9, %6 : vector<16x128xf32>
    %11 = arith.addf %6, %10 : vector<16x128xf32>
    %cst_6 = arith.constant 0.797884583 : f32
    %12 = vector.broadcast %cst_6 : f32 to vector<16x128xf32>
    %13 = arith.mulf %12, %11 : vector<16x128xf32>
    %cst_7 = arith.constant 5.000000e-01 : f32
    %14 = vector.broadcast %cst_7 : f32 to vector<16x128xf32>
    %15 = arith.mulf %14, %6 : vector<16x128xf32>
    %16 = math.tanh %13 : vector<16x128xf32>
    %cst_8 = arith.constant 1.000000e+00 : f32
    %17 = vector.broadcast %cst_8 : f32 to vector<16x128xf32>
    %18 = arith.addf %17, %16 : vector<16x128xf32>
    %19 = arith.mulf %15, %18 : vector<16x128xf32>
    %20 = arith.truncf %19 : vector<16x128xf32> to vector<16x128xbf16>
    %c0_9 = arith.constant 0 : index
    %c0_10 = arith.constant 0 : index
    %21 = vector.load %arg5[%c0_9, %c0_10] : memref<128x32xbf16, #tpu.memory_space<vmem>>, vector<128x32xbf16>
    %cst_11 = arith.constant dense<0.000000e+00> : vector<16x32xf32>
    %22 = tpu.matmul %20, %21, %cst_11 {dimension_numbers = #tpu.dot_dimension_numbers<[1], [0], [0], [1], [0, 0, 1, 1], [], []>} : vector<16x128xbf16>, vector<128x32xbf16>, vector<16x32xf32> -> vector<16x32xf32>
    %c0_12 = arith.constant 0 : index
    %c0_13 = arith.constant 0 : index
    %23 = vector.load %arg6[%c0_12, %c0_13] : memref<1x32xf32, #tpu.memory_space<vmem>>, vector<1x32xf32>
    %24 = vector.broadcast %23 : vector<1x32xf32> to vector<16x32xf32>
    %25 = arith.addf %22, %24 : vector<16x32xf32>
    %c0_14 = arith.constant 0 : index
    %c0_15 = arith.constant 0 : index
    %26 = vector.load %arg7[%c0_14, %c0_15] : memref<16x32xf32, #tpu.memory_space<vmem>>, vector<16x32xf32>
    tpu.vector_store %arg7[%c0_14, %c0_15], %25 {strides = array<i32>} : memref<16x32xf32, #tpu.memory_space<vmem>>, vector<16x32xf32>,
    return
  }
  func.func @transform_0(%arg0: i32, %arg1: i32) -> (i32, i32) {
    %c0_i32 = arith.constant 0 : i32
    %c0_i32_0 = arith.constant 0 : i32
    return %arg0, %c0_i32 : i32, i32
  }
  func.func @transform_1(%arg0: i32, %arg1: i32) -> (i32, i32) {
    %c0_i32 = arith.constant 0 : i32
    %c0_i32_0 = arith.constant 0 : i32
    return %c0_i32, %arg1 : i32, i32
  }
  func.func @transform_2(%arg0: i32, %arg1: i32) -> (i32, i32) {
    %c0_i32 = arith.constant 0 : i32
    %c0_i32_0 = arith.constant 0 : i32
    return %c0_i32, %arg1 : i32, i32
  }
  func.func @transform_3(%arg0: i32, %arg1: i32) -> (i32, i32) {
    %c0_i32 = arith.constant 0 : i32
    %c0_i32_0 = arith.constant 0 : i32
    return %arg1, %c0_i32 : i32, i32
  }
  func.func @transform_4(%arg0: i32, %arg1: i32) -> (i32, i32) {
    %c0_i32 = arith.constant 0 : i32
    %c0_i32_0 = arith.constant 0 : i32
    %c0_i32_1 = arith.constant 0 : i32
    return %c0_i32, %c0_i32_0 : i32, i32
  }
  func.func @transform_5(%arg0: i32, %arg1: i32) -> (i32, i32) {
    %c0_i32 = arith.constant 0 : i32
    %c0_i32_0 = arith.constant 0 : i32
    return %arg0, %c0_i32 : i32, i32
  }
}

</mosaic_0001>

<llo_original>
// kernel: position_wise_feed_forward.1
$region0: #{position_wise_feed_forward.1}
  #allocation0 [shape = 'u32[]', space=smem, size = 0x4, offset = 0x4, fixed_abs, tag = 'smem constant byte address 0x4 - core index']
  #allocation1 [shape = 'u32[144,128]{1,0:T(1,128)}', space=vmem, size = 0x12000, scoped, tag = 'internal scratch']
  %s0 = inlined_call_operand.vmem [shape: f32[16,32], index: 0, kind: input, shape index: {}]
  %s1 = inlined_call_operand.vmem [shape: bf16[32,128], index: 1, kind: input, shape index: {}]
  %s2 = inlined_call_operand.vmem [shape: f32[1,128], index: 2, kind: input, shape index: {}]
  %s3 = inlined_call_operand.vmem [shape: bf16[128,32], index: 3, kind: input, shape index: {}]
  %s4 = inlined_call_operand.vmem [shape: f32[1,32], index: 4, kind: input, shape index: {}]
  %s5 = inlined_call_operand.hbm [shape: f32[16,32], index: 5, kind: output, shape index: {}]
  %s6 = sld [smem:[#allocation0]]
  $region30: #{position_wise_feed_forward.1} parent=0
    _
  %s8 = ssub.s32 1, %s6
  %s9 = scalar_select 0, %s8, %s6
  $region1: #{position_wise_feed_forward.1} parent=0
    #allocation2 [shape = 'u8[8192]{0}', space=vmem, size = 0x2000, scoped, tag = 'output window, operand 0, single buffered']
    #allocation3 [shape = 's32[1]{0}', space=sflag, size = 0x4, scoped, tag = 'scoped memory for position_wise_feed_forward.1']
    %10 = vsyncpa [#allocation3], 0
    // Predicated region
    $region2: #{position_wise_feed_forward.1} parent=1 // pred_check
      _
    $region3: #{position_wise_feed_forward.1} parent=1 // pred_check_branch
      %12 = sbr.rel (0) target = $region5
    $region4: #{position_wise_feed_forward.1} parent=1 // pred_region
      _
    $region5: #{position_wise_feed_forward.1} parent=1 // pred_fallthru
      _
    // Predicated region
    $region6: #{position_wise_feed_forward.1} parent=1 // pred_check
      _
    $region7: #{position_wise_feed_forward.1} parent=1 // pred_check_branch
      %14 = sbr.rel (0) target = $region9
    $region8: #{position_wise_feed_forward.1} parent=1 // pred_region
      _
    $region9: #{position_wise_feed_forward.1} parent=1 // pred_fallthru
      _
    // Predicated region
    $region10: #{position_wise_feed_forward.1} parent=1 // pred_check
      _
    $region11: #{position_wise_feed_forward.1} parent=1 // pred_check_branch
      %16 = sbr.rel (0) target = $region13
    $region12: #{position_wise_feed_forward.1} parent=1 // pred_region
      _
    $region13: #{position_wise_feed_forward.1} parent=1 // pred_fallthru
      _
    // Predicated region
    $region14: #{position_wise_feed_forward.1} parent=1 // pred_check
      _
    $region15: #{position_wise_feed_forward.1} parent=1 // pred_check_branch
      %18 = sbr.rel (0) target = $region17
    $region16: #{position_wise_feed_forward.1} parent=1 // pred_region
      _
    $region17: #{position_wise_feed_forward.1} parent=1 // pred_fallthru
      _
    // Predicated region
    $region18: #{position_wise_feed_forward.1} parent=1 // pred_check
      _
    $region19: #{position_wise_feed_forward.1} parent=1 // pred_check_branch
      %20 = sbr.rel (0) target = $region21
    $region20: #{position_wise_feed_forward.1} parent=1 // pred_region
      _
    $region21: #{position_wise_feed_forward.1} parent=1 // pred_fallthru
      _
    %v22 = vld [vmem:[%s0] sm:$0xff]
    %v23 = vld [vmem:[%s0 + $0x8] sm:$0xff]
    %v24 = vpack.c.bf16 %v23, %v22
    %v25 = vld [vmem:[%s1] sm:$0xf]
    %v26 = vld [vmem:[%s1 + $0x4] sm:$0xf]
    %v27 = vld [vmem:[%s1 + $0x8] sm:$0xf]
    %v28 = vld [vmem:[%s1 + $0xc] sm:$0xf]
    %v29 = vld [vmem:[%s2] sm:$0x1]
    %v31 = vlaneseq
    %v32 = vshrl.u32 %v31, 7
    %v33 = vsub.s32 0, %v32
    %v34 = vrot.slane %v29, %v33
    %v40 = vunpack.c.l.b16 %v25
    %v41 = vunpack.c.l.b16 %v26
    %v42 = vunpack.c.l.b16 %v27
    %v43 = vunpack.c.l.b16 %v28
    %v44 = vpack.c.b16 %v41, %v40
    %v45 = vpack.c.b16 %v43, %v42
    %vm48 = vcmask 261120
    %v50 = vsel %vm48, %v24, 0
    %52 = vmatprep.subr.bf16.mxu0 0
    %53 = vmatpush1.bf16.msra.mxu0 %v44
    %54 = vmatprep.subr.bf16.mxu0 0
    %55 = vmatpush1.bf16.msra.mxu0 %v45
    %56 = vmatprep.subr.bf16.mxu0 0
    %57 = vmatpush1.bf16.msra.mxu0 0
    %58 = vmatprep.subr.bf16.mxu0 0
    %59 = vmatpush1.bf16.msra.mxu0 0
    %60 = vmatprep.subr.bf16.mxu0 0
    %61 = vmatpush1.bf16.msra.mxu0 0
    %62 = vmatprep.subr.bf16.mxu0 0
    %63 = vmatpush1.bf16.msra.mxu0 0
    %64 = vmatprep.subr.bf16.mxu0 0
    %65 = vmatpush1.bf16.msra.mxu0 0
    %66 = vmatprep.subr.bf16.mxu0 0
    %67 = vmatpush1.bf16.msra.mxu0 0
    %68 = vmatprep.subr.bf16.mxu0 0
    %69 = vmatpush1.bf16.msra.mxu0 0
    %70 = vmatprep.subr.bf16.mxu0 0
    %71 = vmatpush1.bf16.msra.mxu0 0
    %72 = vmatprep.subr.bf16.mxu0 0
    %73 = vmatpush1.bf16.msra.mxu0 0
    %74 = vmatprep.subr.bf16.mxu0 0
    %75 = vmatpush1.bf16.msra.mxu0 0
    %76 = vmatprep.subr.bf16.mxu0 0
    %77 = vmatpush1.bf16.msra.mxu0 0
    %78 = vmatprep.subr.bf16.mxu0 0
    %79 = vmatpush1.bf16.msra.mxu0 0
    %80 = vmatprep.subr.bf16.mxu0 0
    %81 = vmatpush1.bf16.msra.mxu0 0
    %82 = vmatprep.subr.bf16.mxu0 0
    %83 = vmatpush1.bf16.msra.mxu0 0
    %84 = vmatprep.mubr.bf16.mxu0 0
    %85 = vmatmul.mubr.bf16.gmra.mrb[0].mxu0 %v50
    %v86 = vpop.f32.mrb[0].mxu0
    %v87 = vadd.f32 %v34, %v86
    %v88 = vpop.f32.mrb[0].mxu0
    %v89 = vpop.f32.mrb[0].mxu0
    %v90 = vadd.f32 %v34, %v89
    %v91 = vpop.f32.mrb[0].mxu0
    %92 = vdwg.mxu0
    %v93 = vmul.f32 %v87, 0.044715
    %v94 = vmul.f32 %v90, 0.044715
    %v95 = vmul.f32 %v93, %v87
    %v96 = vmul.f32 %v94, %v90
    %v97 = vmul.f32 %v95, %v87
    %v98 = vmul.f32 %v96, %v90
    %v99 = vadd.f32 %v87, %v97
    %v100 = vadd.f32 %v90, %v98
    %v101 = vmul.f32 %v99, 0.7978846
    %v102 = vmul.f32 %v100, 0.7978846
    %v103 = vmul.f32 %v87, 0.5
    %v104 = vmul.f32 %v90, 0.5
    %v105 = vtanh.pop %v101
    %v106 = vtanh.pop %v102
    %v107 = vadd.f32 %v105, 1.0
    %v108 = vadd.f32 %v106, 1.0
    %v109 = vmul.f32 %v103, %v107
    %v110 = vmul.f32 %v104, %v108
    %v111 = vpack.c.bf16 %v110, %v109
    %v112 = vld [vmem:[%s3] sm:$0xf]
    %v113 = vld [vmem:[%s3 + $0x4] sm:$0xf]
    %v114 = vld [vmem:[%s3 + $0x8] sm:$0xf]
    %v115 = vld [vmem:[%s3 + $0xc] sm:$0xf]
    %v116 = vld [vmem:[%s3 + $0x10] sm:$0xf]
    %v117 = vld [vmem:[%s3 + $0x14] sm:$0xf]
    %v118 = vld [vmem:[%s3 + $0x18] sm:$0xf]
    %v119 = vld [vmem:[%s3 + $0x1c] sm:$0xf]
    %v120 = vld [vmem:[%s3 + $0x20] sm:$0xf]
    %v121 = vld [vmem:[%s3 + $0x24] sm:$0xf]
    %v122 = vld [vmem:[%s3 + $0x28] sm:$0xf]
    %v123 = vld [vmem:[%s3 + $0x2c] sm:$0xf]
    %v124 = vld [vmem:[%s3 + $0x30] sm:$0xf]
    %v125 = vld [vmem:[%s3 + $0x34] sm:$0xf]
    %v126 = vld [vmem:[%s3 + $0x38] sm:$0xf]
    %v127 = vld [vmem:[%s3 + $0x3c] sm:$0xf]
    %v128 = vld [vmem:[%s4] sm:$0x1]
    %v130 = vlaneseq
    %v131 = vshrl.u32 %v130, 7
    %v132 = vsub.s32 0, %v131
    %v133 = vrot.slane %v128, %v132
    %v151 = vunpack.c.l.b16 %v112
    %v152 = vunpack.c.l.b16 %v113
    %v153 = vunpack.c.l.b16 %v114
    %v154 = vunpack.c.l.b16 %v115
    %v155 = vunpack.c.l.b16 %v116
    %v156 = vunpack.c.l.b16 %v117
    %v157 = vunpack.c.l.b16 %v118
    %v158 = vunpack.c.l.b16 %v119
    %v159 = vunpack.c.l.b16 %v120
    %v160 = vunpack.c.l.b16 %v121
    %v161 = vunpack.c.l.b16 %v122
    %v162 = vunpack.c.l.b16 %v123
    %v163 = vunpack.c.l.b16 %v124
    %v164 = vunpack.c.l.b16 %v125
    %v165 = vunpack.c.l.b16 %v126
    %v166 = vunpack.c.l.b16 %v127
    %v167 = vpack.c.b16 %v152, %v151
    %v168 = vpack.c.b16 %v154, %v153
    %v169 = vpack.c.b16 %v156, %v155
    %v170 = vpack.c.b16 %v158, %v157
    %v171 = vpack.c.b16 %v160, %v159
    %v172 = vpack.c.b16 %v162, %v161
    %v173 = vpack.c.b16 %v164, %v163
    %v174 = vpack.c.b16 %v166, %v165
    %183 = vmatprep.subr.bf16.mxu0 0
    %184 = vmatpush1.bf16.msra.mxu0 %v167
    %185 = vmatprep.subr.bf16.mxu0 0
    %186 = vmatpush1.bf16.msra.mxu0 %v168
    %187 = vmatprep.subr.bf16.mxu0 0
    %188 = vmatpush1.bf16.msra.mxu0 %v169
    %189 = vmatprep.subr.bf16.mxu0 0
    %190 = vmatpush1.bf16.msra.mxu0 %v170
    %191 = vmatprep.subr.bf16.mxu0 0
    %192 = vmatpush1.bf16.msra.mxu0 %v171
    %193 = vmatprep.subr.bf16.mxu0 0
    %194 = vmatpush1.bf16.msra.mxu0 %v172
    %195 = vmatprep.subr.bf16.mxu0 0
    %196 = vmatpush1.bf16.msra.mxu0 %v173
    %197 = vmatprep.subr.bf16.mxu0 0
    %198 = vmatpush1.bf16.msra.mxu0 %v174
    %199 = vmatprep.subr.bf16.mxu0 0
    %200 = vmatpush1.bf16.msra.mxu0 0
    %201 = vmatprep.subr.bf16.mxu0 0
    %202 = vmatpush1.bf16.msra.mxu0 0
    %203 = vmatprep.subr.bf16.mxu0 0
    %204 = vmatpush1.bf16.msra.mxu0 0
    %205 = vmatprep.subr.bf16.mxu0 0
    %206 = vmatpush1.bf16.msra.mxu0 0
    %207 = vmatprep.subr.bf16.mxu0 0
    %208 = vmatpush1.bf16.msra.mxu0 0
    %209 = vmatprep.subr.bf16.mxu0 0
    %210 = vmatpush1.bf16.msra.mxu0 0
    %211 = vmatprep.subr.bf16.mxu0 0
    %212 = vmatpush1.bf16.msra.mxu0 0
    %213 = vmatprep.subr.bf16.mxu0 0
    %214 = vmatpush1.bf16.msra.mxu0 0
    %215 = vmatprep.mubr.bf16.mxu0 0
    %216 = vmatmul.mubr.bf16.gmra.mrb[0].mxu0 %v111
    %v217 = vpop.f32.mrb[0].mxu0
    %v218 = vadd.f32 %v133, %v217
    %v219 = vpop.f32.mrb[0].mxu0
    %v220 = vpop.f32.mrb[0].mxu0
    %v221 = vadd.f32 %v133, %v220
    %v222 = vpop.f32.mrb[0].mxu0
    %223 = vdwg.mxu0
    %224 = vst.msk [vmem:[#allocation2] sm:$0xff] %vm48, %v218
    %225 = vst.msk [vmem:[#allocation2 + $0x8] sm:$0xff] %vm48, %v221
    // Predicated region
    $region22: #{position_wise_feed_forward.1} parent=1 // pred_check
      _
    $region23: #{position_wise_feed_forward.1} parent=1 // pred_check_branch
      %227 = sbr.rel (0) target = $region25
    $region24: #{position_wise_feed_forward.1} parent=1 // pred_region
      %s229 = ssub.s32 256, 256
      %230 = vsyncadd [#allocation3], %s229
      %s231 = sshll.u32 [#allocation2], 4
      %s232 = int_to_ptr.vmem [resolvable:$true] %s231
      %237 = dma.vmem_to_hbm [thread:$0]  %s232, 256, %s5, [#allocation3], 128, 128, 8
    $region25: #{position_wise_feed_forward.1} parent=1 // pred_fallthru
      _
    // Predicated region
    $region26: #{position_wise_feed_forward.1} parent=1 // pred_check
      _
    $region27: #{position_wise_feed_forward.1} parent=1 // pred_check_branch
      %239 = sbr.rel (0) target = $region29
    $region28: #{position_wise_feed_forward.1} parent=1 // pred_region
      %240 = dma.done [#allocation3], 256
    $region29: #{position_wise_feed_forward.1} parent=1 // pred_fallthru
      _
    %241 = vsyncpa [#allocation3], 1

</llo_original>
